<compile_context>
chip_gen: v6e
topology: v6e:2x2x1
jax: 0.10.0
libtpu: 0.0.40
codegen_flags: <defaults>
</compile_context>

<pallas_src>
import functools

import jax
import jax.numpy as jnp
from jax import lax
from jax.experimental import pallas as pl
from jax.experimental.pallas import tpu as pltpu


_SINGLE_SHOT_MAX_N = 1024  # padded-N threshold for the fused single-block kernel


def _round_up(x, m):
    return (x + m - 1) // m * m


def _vmem_limit_bytes():
    """Scoped-VMEM limit: physical minus headroom, capped at 100 MiB."""
    cap = 64 * 1024 * 1024  # conservative fallback (v7x physical)
    try:
        info_cap = pltpu.get_tpu_info().vmem_capacity_bytes
        if info_cap:
            cap = int(info_cap)
    except Exception:
        pass
    return int(min(cap - 8 * 1024 * 1024, 100 * 1024 * 1024))


# --------------------------------------------------------------------------- #
# Single-shot fused kernel (small / moderate N)
# --------------------------------------------------------------------------- #
def _contrast_loss2_kernel(f_ref, l_ref, out_ref, *, neg_inv_temp, n_valid):
    f = f_ref[...]                       # [Np, Fp] fp32
    lab = l_ref[...]                     # [Np, Lp] bf16 (exact for 0/1 labels)
    n = f.shape[0]

    row_ids = lax.broadcasted_iota(jnp.int32, (n, 1), 0)   # [N,1]
    col_ids = lax.broadcasted_iota(jnp.int32, (1, n), 1)   # [1,N]
    off_diag = row_ids != col_ids                          # broadcast -> [N,N] bool

    # ---- C = labels @ labels.T, diagonal zeroed (padded rows/cols already 0) --
    C = lax.dot_general(lab, lab, (((1,), (1,)), ((), ())),
                        preferred_element_type=jnp.float32)          # [N,N]
    C = jnp.where(off_diag, C, 0.0)

    # ---- beta[i, j] = C[i, j] / sum_k C[j, k] --------------------------------
    # C is symmetric -> axis-0 sum equals the reference's axis-1 sum and already
    # lands in the broadcast-ready [1, N] layout (no transpose).
    col_sum = jnp.sum(C, axis=0, keepdims=True)                      # [1,N]
    if n_valid < n:
        col_sum = jnp.where(col_ids < n_valid, col_sum, 1.0)         # padded lanes only
    beta = C / col_sum                                               # exact division

    # ---- D = exp(-cdist(f, f) / temp) ----------------------------------------
    sq = jnp.sum(f * f, axis=1, keepdims=True)                       # [N,1]
    gram = lax.dot_general(f, f, (((1,), (1,)), ((), ())),
                           preferred_element_type=jnp.float32)       # [N,N]
    d2 = jnp.maximum(sq + sq.T - 2.0 * gram, 0.0)
    log_D = jnp.sqrt(d2) * neg_inv_temp        # == log(exp(-dist/temp)), no EUP log
    D = jnp.exp(log_D)
    if n_valid < n:
        D = jnp.where(row_ids < n_valid, D, 0.0)   # only padded rows corrupt col sums

    # ---- D2[j] = sum_k D[k, j] - 1 (symmetric -> axis-0 sum, [1,N] layout) ----
    D2 = jnp.sum(D, axis=0, keepdims=True) - 1.0
    if n_valid < n:
        D2 = jnp.where(col_ids < n_valid, D2, 1.0)   # keep log finite; beta is 0 there

    # beta is exactly 0 on the diagonal and at every padded row/col, so no final
    # mask of the loss matrix is needed.
    losses = -beta * (log_D - jnp.log(D2))
    out_ref[0] = jnp.sum(losses)


# --------------------------------------------------------------------------- #
# Two-phase tiled kernels (large N)
# --------------------------------------------------------------------------- #
def _phase1_colsums_kernel(f_r_ref, lab_r_ref, f_c_ref, lab_c_ref, sqc_ref,
                           csum_ref, d2_ref, *, neg_inv_temp, n_valid, n_total):
    """Accumulate [1, col_block] column sums of C and of D over row blocks."""
    j = pl.program_id(0)          # column block (parallel)
    i = pl.program_id(1)          # row block (reduction)
    rb = f_r_ref.shape[0]
    cb = f_c_ref.shape[0]

    @pl.when(i == 0)
    def _():
        csum_ref[...] = jnp.zeros_like(csum_ref)
        d2_ref[...] = jnp.zeros_like(d2_ref)

    row_g = i * rb + lax.broadcasted_iota(jnp.int32, (rb, 1), 0)
    col_g = j * cb + lax.broadcasted_iota(jnp.int32, (1, cb), 1)

    # Column sums of C (padded rows/cols are zero because padded labels are zero).
    C = lax.dot_general(lab_r_ref[...], lab_c_ref[...], (((1,), (1,)), ((), ())),
                        preferred_element_type=jnp.float32)
    C = jnp.where(row_g == col_g, 0.0, C)
    csum_ref[...] += jnp.sum(C, axis=0, keepdims=True)

    # Column sums of D = exp(-dist/temp).
    f_rows = f_r_ref[...]
    sq_r = jnp.sum(f_rows * f_rows, axis=1, keepdims=True)           # [rb,1]
    gram = lax.dot_general(f_rows, f_c_ref[...], (((1,), (1,)), ((), ())),
                           preferred_element_type=jnp.float32)
    dist2 = jnp.maximum(sq_r + sqc_ref[...] - 2.0 * gram, 0.0)
    D = jnp.exp(jnp.sqrt(dist2) * neg_inv_temp)
    if n_valid < n_total:
        D = jnp.where(row_g < n_valid, D, 0.0)   # only padded rows corrupt col sums
    d2_ref[...] += jnp.sum(D, axis=0, keepdims=True)

    @pl.when(i == pl.num_programs(1) - 1)
    def _():
        d2 = d2_ref[...] - 1.0                   # remove the D[j, j] == 1 diagonal term
        if n_valid < n_total:
            lane_valid = col_g < n_valid
            csum_ref[...] = jnp.where(lane_valid, csum_ref[...], 1.0)
            d2 = jnp.where(lane_valid, d2, 1.0)
        d2_ref[...] = d2


def _phase2_loss_kernel(f_r_ref, lab_r_ref, f_c_ref, lab_c_ref, sqc_ref,
                        csum_ref, d2_ref, out_ref, *, neg_inv_temp):
    """Accumulate the loss contribution of one (row_block, col_block) tile."""
    i = pl.program_id(0)          # row block (parallel -> both v7x TensorCores)
    j = pl.program_id(1)          # column block (accumulation axis)
    rb = f_r_ref.shape[0]
    cb = f_c_ref.shape[0]

    @pl.when(j == 0)
    def _():
        out_ref[...] = jnp.zeros_like(out_ref)

    row_g = i * rb + lax.broadcasted_iota(jnp.int32, (rb, 1), 0)
    col_g = j * cb + lax.broadcasted_iota(jnp.int32, (1, cb), 1)

    C = lax.dot_general(lab_r_ref[...], lab_c_ref[...], (((1,), (1,)), ((), ())),
                        preferred_element_type=jnp.float32)
    C = jnp.where(row_g == col_g, 0.0, C)
    beta = C / csum_ref[...]                     # exact division; padded lanes are 1.0

    f_rows = f_r_ref[...]
    sq_r = jnp.sum(f_rows * f_rows, axis=1, keepdims=True)
    gram = lax.dot_general(f_rows, f_c_ref[...], (((1,), (1,)), ((), ())),
                           preferred_element_type=jnp.float32)
    dist2 = jnp.maximum(sq_r + sqc_ref[...] - 2.0 * gram, 0.0)
    log_D = jnp.sqrt(dist2) * neg_inv_temp

    # beta == 0 on the diagonal and at every padded row/col; D2 padded lanes are
    # 1.0 (log == 0), so the tile needs no extra masking.
    losses = -beta * (log_D - jnp.log(d2_ref[...]))
    out_ref[...] += jnp.sum(losses)              # scalar broadcast into the (1,8,128) block


# --------------------------------------------------------------------------- #
# Wrapper
# --------------------------------------------------------------------------- #
def contrast_loss2(features, labels, temp=10.0, *, block_n=None):
    """Pallas implementation of ContrastLoss2.forward. Returns a scalar.

    block_n: force the two-phase tiled path with square blocks of this size
             (rounded to a multiple of 128). Default: single-shot for padded
             N <= 1024, tiled with 512-wide blocks otherwise.
    """
    n, fdim = features.shape
    n_l, ldim = labels.shape
    assert n == n_l, "features and labels must share the batch dimension"

    f_pad = _round_up(fdim, 128)
    l_pad = _round_up(ldim, 128)
    neg_inv_temp = -1.0 / float(temp)
    vmem_limit = _vmem_limit_bytes()

    # bf16 labels pack 2 rows per sublane -> pad N to a multiple of 16.
    n16 = _round_up(n, 16)
    use_tiled = (block_n is not None) or (n16 > _SINGLE_SHOT_MAX_N)

    if not use_tiled:
        n_pad = n16
        f = jnp.pad(jnp.asarray(features, jnp.float32),
                    ((0, n_pad - n), (0, f_pad - fdim)))
        lab = jnp.pad(jnp.asarray(labels, jnp.bfloat16),
                      ((0, n_pad - n), (0, l_pad - ldim)))
        kernel = functools.partial(_contrast_loss2_kernel,
                                   neg_inv_temp=neg_inv_temp, n_valid=n)
        out = pl.pallas_call(
            kernel,
            out_shape=jax.ShapeDtypeStruct((1,), jnp.float32),
            in_specs=[
                pl.BlockSpec(memory_space=pltpu.MemorySpace.VMEM),
                pl.BlockSpec(memory_space=pltpu.MemorySpace.VMEM),
            ],
            # Scalar result -> SMEM (no masked vst + padded VMEM writeback).
            out_specs=pl.BlockSpec(memory_space=pltpu.MemorySpace.SMEM),
            compiler_params=pltpu.CompilerParams(vmem_limit_bytes=vmem_limit),
        )(f, lab)
        return out[0]

    # ------------------------- two-phase tiled path ------------------------- #
    n128 = _round_up(n16, 128)
    bn = 512 if block_n is None else int(block_n)
    bn = max(128, _round_up(bn, 128))
    bn = min(bn, n128)
    n_pad = _round_up(n128, bn)
    nrb = n_pad // bn
    ncb = n_pad // bn

    f = jnp.pad(jnp.asarray(features, jnp.float32),
                ((0, n_pad - n), (0, f_pad - fdim)))
    lab = jnp.pad(jnp.asarray(labels, jnp.bfloat16),
                  ((0, n_pad - n), (0, l_pad - ldim)))
    # Row-layout squared norms computed once (avoids per-tile XLU transposes).
    sqc = jnp.sum(f * f, axis=1)[None, :]                            # [1, Np]

    # Phase 1: [1, N] column sums of C and D (D2 = sum - 1, padded lanes -> 1).
    csum, d2 = pl.pallas_call(
        functools.partial(_phase1_colsums_kernel, neg_inv_temp=neg_inv_temp,
                          n_valid=n, n_total=n_pad),
        out_shape=(jax.ShapeDtypeStruct((1, n_pad), jnp.float32),
                   jax.ShapeDtypeStruct((1, n_pad), jnp.float32)),
        grid_spec=pltpu.PrefetchScalarGridSpec(
            num_scalar_prefetch=0,
            grid=(ncb, nrb),                              # (col blocks, row blocks)
            in_specs=[
                pl.BlockSpec((bn, f_pad), lambda j, i: (i, 0)),   # f  rows
                pl.BlockSpec((bn, l_pad), lambda j, i: (i, 0)),   # lab rows
                pl.BlockSpec((bn, f_pad), lambda j, i: (j, 0)),   # f  cols
                pl.BlockSpec((bn, l_pad), lambda j, i: (j, 0)),   # lab cols
                pl.BlockSpec((1, bn), lambda j, i: (0, j)),       # sq cols [1, cb]
            ],
            out_specs=[
                pl.BlockSpec((1, bn), lambda j, i: (0, j)),       # col_sum(C)
                pl.BlockSpec((1, bn), lambda j, i: (0, j)),       # D2
            ],
        ),
        compiler_params=pltpu.CompilerParams(
            dimension_semantics=("parallel", "arbitrary"),
            vmem_limit_bytes=vmem_limit),
    )(f, lab, f, lab, sqc)

    # Phase 2: (row_block, col_block) loss accumulation; per-row-block partials.
    partial = pl.pallas_call(
        functools.partial(_phase2_loss_kernel, neg_inv_temp=neg_inv_temp),
        out_shape=jax.ShapeDtypeStruct((nrb, 8, 128), jnp.float32),
        grid_spec=pltpu.PrefetchScalarGridSpec(
            num_scalar_prefetch=0,
            grid=(nrb, ncb),                              # (row blocks, col blocks)
            in_specs=[
                pl.BlockSpec((bn, f_pad), lambda i, j: (i, 0)),   # f  rows
                pl.BlockSpec((bn, l_pad), lambda i, j: (i, 0)),   # lab rows
                pl.BlockSpec((bn, f_pad), lambda i, j: (j, 0)),   # f  cols
                pl.BlockSpec((bn, l_pad), lambda i, j: (j, 0)),   # lab cols
                pl.BlockSpec((1, bn), lambda i, j: (0, j)),       # sq cols
                pl.BlockSpec((1, bn), lambda i, j: (0, j)),       # col_sum(C)
                pl.BlockSpec((1, bn), lambda i, j: (0, j)),       # D2
            ],
            out_specs=pl.BlockSpec((1, 8, 128), lambda i, j: (i, 0, 0)),
        ),
        compiler_params=pltpu.CompilerParams(
            dimension_semantics=("parallel", "arbitrary"),
            vmem_limit_bytes=vmem_limit),
    )(f, lab, f, lab, sqc, csum, d2)

    return jnp.sum(partial[:, 0, 0])


def _reference_loss(features, labels, temp=10.0):
    """Pure-JAX reference mirroring the PyTorch forward, for validation."""
    f = features.astype(jnp.float32)
    lab = labels.astype(jnp.float32)
    n = f.shape[0]
    C = lab @ lab.T
    C = C * (1.0 - jnp.eye(n, dtype=jnp.float32))
    beta = C / C.sum(axis=1)                       # broadcasts over last dim
    sq = jnp.sum(f * f, axis=1)
    d2 = jnp.maximum(sq[:, None] + sq[None, :] - 2.0 * (f @ f.T), 0.0)
    D = jnp.exp(-jnp.sqrt(d2) / temp)
    D2 = D.sum(axis=1) - 1.0
    losses = -beta * jnp.log(D / D2)               # broadcasts over last dim
    return jnp.sum(losses)


if __name__ == "__main__":
    key = jax.random.PRNGKey(0)
    k1, k2, k3 = jax.random.split(key, 3)

    FEAT, NUM_CLASSES = 32, 4

    # Case 1: single-shot path, small aligned batch (padded 8 -> 16).
    N1 = 8
    feats1 = jax.random.normal(k1, (N1, FEAT), dtype=jnp.float32)
    labels1 = jax.nn.one_hot(jnp.arange(N1) % NUM_CLASSES, NUM_CLASSES, dtype=jnp.float32)
    loss1 = jax.block_until_ready(contrast_loss2(feats1, labels1, temp=10.0))
    ref1 = jax.block_until_ready(_reference_loss(feats1, labels1, temp=10.0))
    assert jnp.allclose(loss1, ref1, rtol=2e-3, atol=1e-2), (loss1, ref1)

    # Case 2: single-shot path, ragged batch (N=12 -> padded to 16, masked in-kernel).
    N2 = 12
    feats2 = jax.random.normal(k2, (N2, FEAT), dtype=jnp.float32)
    labels2 = jax.nn.one_hot(jnp.arange(N2) % NUM_CLASSES, NUM_CLASSES, dtype=jnp.float32)
    loss2 = jax.block_until_ready(contrast_loss2(feats2, labels2, temp=10.0))
    ref2 = jax.block_until_ready(_reference_loss(feats2, labels2, temp=10.0))
    assert jnp.allclose(loss2, ref2, rtol=2e-3, atol=1e-2), (loss2, ref2)

    # Case 3: exercise the two-phase tiled path (N=200 -> padded to 256, 2x2 grid
    # of 128-wide blocks, both phases + padding masks).
    N3 = 200
    feats3 = jax.random.normal(k3, (N3, FEAT), dtype=jnp.float32)
    labels3 = jax.nn.one_hot(jnp.arange(N3) % NUM_CLASSES, NUM_CLASSES, dtype=jnp.float32)
    loss3 = jax.block_until_ready(contrast_loss2(feats3, labels3, temp=10.0, block_n=128))
    ref3 = jax.block_until_ready(_reference_loss(feats3, labels3, temp=10.0))
    assert jnp.allclose(loss3, ref3, rtol=2e-3, atol=1e-1), (loss3, ref3)

    print("KERNEL_OK")
</pallas_src>

<mosaic_0001>
module attributes {stable_mosaic.version = 11 : i64} {
  func.func @_contrast_loss2_kernel(%arg0: memref<16x128xf32, #tpu.memory_space<vmem>>, %arg1: memref<16x128xbf16, #tpu.memory_space<vmem>>, %arg2: memref<1xf32, #tpu.memory_space<smem>>) attributes {dimension_semantics = [], scalar_prefetch = 0 : i64, scratch_operands = 0 : i64, tpu.core_type = #tpu.core_type<tc>} {
    %c0 = arith.constant 0 : index
    %c0_0 = arith.constant 0 : index
    %0 = vector.load %arg0[%c0, %c0_0] : memref<16x128xf32, #tpu.memory_space<vmem>>, vector<16x128xf32>
    %c0_1 = arith.constant 0 : index
    %c0_2 = arith.constant 0 : index
    %1 = vector.load %arg1[%c0_1, %c0_2] : memref<16x128xbf16, #tpu.memory_space<vmem>>, vector<16x128xbf16>
    %2 = tpu.iota {dimensions = array<i32: 0>} : vector<16x1xi32>
    %3 = tpu.iota {dimensions = array<i32: 1>} : vector<1x16xi32>
    %4 = vector.broadcast %2 : vector<16x1xi32> to vector<16x16xi32>
    %5 = vector.broadcast %3 : vector<1x16xi32> to vector<16x16xi32>
    %6 = arith.cmpi ne, %4, %5 : vector<16x16xi32>
    %cst = arith.constant dense<0.000000e+00> : vector<16x16xf32>
    %7 = tpu.matmul %1, %1, %cst {dimension_numbers = #tpu.dot_dimension_numbers<[1], [1], [0], [0], [0, 0, 1, 0], [], []>} : vector<16x128xbf16>, vector<16x128xbf16>, vector<16x16xf32> -> vector<16x16xf32>
    %cst_3 = arith.constant 0.000000e+00 : f32
    %8 = vector.broadcast %cst_3 : f32 to vector<16x16xf32>
    %9 = arith.select %6, %7, %8 : vector<16x16xi1>, vector<16x16xf32>
    %cst_4 = arith.constant dense<0.000000e+00> : vector<16xf32>
    %10 = vector.multi_reduction <add>, %9, %cst_4 [0] : vector<16x16xf32> to vector<16xf32>
    %11 = vector.shape_cast %10 : vector<16xf32> to vector<1x16xf32>
    %c8_i32 = arith.constant 8 : i32
    %12 = vector.broadcast %c8_i32 : i32 to vector<1x16xi32>
    %13 = arith.cmpi slt, %3, %12 : vector<1x16xi32>
    %cst_5 = arith.constant 1.000000e+00 : f32
    %14 = vector.broadcast %cst_5 : f32 to vector<1x16xf32>
    %15 = arith.select %13, %11, %14 : vector<1x16xi1>, vector<1x16xf32>
    %16 = vector.broadcast %15 : vector<1x16xf32> to vector<16x16xf32>
    %17 = arith.divf %9, %16 : vector<16x16xf32>
    %18 = arith.mulf %0, %0 : vector<16x128xf32>
    %cst_6 = arith.constant dense<0.000000e+00> : vector<16xf32>
    %19 = vector.multi_reduction <add>, %18, %cst_6 [1] : vector<16x128xf32> to vector<16xf32>
    %20 = vector.shape_cast %19 : vector<16xf32> to vector<16x1xf32>
    %cst_7 = arith.constant dense<0.000000e+00> : vector<16x16xf32>
    %21 = tpu.matmul %0, %0, %cst_7 {dimension_numbers = #tpu.dot_dimension_numbers<[1], [1], [0], [0], [0, 0, 1, 0], [], []>} : vector<16x128xf32>, vector<16x128xf32>, vector<16x16xf32> -> vector<16x16xf32>
    %22 = tpu.transpose %20, [1, 0] : vector<16x1xf32> -> vector<1x16xf32>
    %23 = vector.broadcast %20 : vector<16x1xf32> to vector<16x16xf32>
    %24 = vector.broadcast %22 : vector<1x16xf32> to vector<16x16xf32>
    %25 = arith.addf %23, %24 : vector<16x16xf32>
    %cst_8 = arith.constant 2.000000e+00 : f32
    %26 = vector.broadcast %cst_8 : f32 to vector<16x16xf32>
    %27 = arith.mulf %26, %21 : vector<16x16xf32>
    %28 = arith.subf %25, %27 : vector<16x16xf32>
    %cst_9 = arith.constant 0.000000e+00 : f32
    %29 = vector.broadcast %cst_9 : f32 to vector<16x16xf32>
    %30 = arith.maximumf %28, %29 : vector<16x16xf32>
    %31 = math.sqrt %30 : vector<16x16xf32>
    %cst_10 = arith.constant -1.000000e-01 : f32
    %32 = vector.broadcast %cst_10 : f32 to vector<16x16xf32>
    %33 = arith.mulf %31, %32 : vector<16x16xf32>
    %34 = math.exp %33 : vector<16x16xf32>
    %c8_i32_11 = arith.constant 8 : i32
    %35 = vector.broadcast %c8_i32_11 : i32 to vector<16x1xi32>
    %36 = arith.cmpi slt, %2, %35 : vector<16x1xi32>
    %cst_12 = arith.constant 0.000000e+00 : f32
    %37 = vector.shape_cast %36 : vector<16x1xi1> to vector<16x1xi1>
    %38 = vector.broadcast %37 : vector<16x1xi1> to vector<16x16xi1>
    %39 = vector.broadcast %cst_12 : f32 to vector<16x16xf32>
    %40 = arith.select %38, %34, %39 : vector<16x16xi1>, vector<16x16xf32>
    %cst_13 = arith.constant dense<0.000000e+00> : vector<16xf32>
    %41 = vector.multi_reduction <add>, %40, %cst_13 [0] : vector<16x16xf32> to vector<16xf32>
    %42 = vector.shape_cast %41 : vector<16xf32> to vector<1x16xf32>
    %cst_14 = arith.constant 1.000000e+00 : f32
    %43 = vector.broadcast %cst_14 : f32 to vector<1x16xf32>
    %44 = arith.subf %42, %43 : vector<1x16xf32>
    %c8_i32_15 = arith.constant 8 : i32
    %45 = vector.broadcast %c8_i32_15 : i32 to vector<1x16xi32>
    %46 = arith.cmpi slt, %3, %45 : vector<1x16xi32>
    %cst_16 = arith.constant 1.000000e+00 : f32
    %47 = vector.broadcast %cst_16 : f32 to vector<1x16xf32>
    %48 = arith.select %46, %44, %47 : vector<1x16xi1>, vector<1x16xf32>
    %cst_17 = arith.constant 0.000000e+00 : f32
    %49 = vector.broadcast %cst_17 : f32 to vector<16x16xf32>
    %50 = arith.subf %49, %17 : vector<16x16xf32>
    %51 = math.log %48 : vector<1x16xf32>
    %52 = vector.broadcast %51 : vector<1x16xf32> to vector<16x16xf32>
    %53 = arith.subf %33, %52 : vector<16x16xf32>
    %54 = arith.mulf %50, %53 : vector<16x16xf32>
    %55 = vector.shape_cast %54 : vector<16x16xf32> to vector<1x16x16xf32>
    %cst_18 = arith.constant dense<0.000000e+00> : vector<1xf32>
    %56 = vector.multi_reduction <add>, %55, %cst_18 [1, 2] : vector<1x16x16xf32> to vector<1xf32>
    %57 = vector.shape_cast %56 : vector<1xf32> to vector<1x1x1xf32>
    %58 = vector.extract %57[0, 0, 0] : f32 from vector<1x1x1xf32>
    %c0_19 = arith.constant 0 : index
    %59 = memref.load %arg2[%c0_19] : memref<1xf32, #tpu.memory_space<smem>>
    memref.store %58, %arg2[%c0_19] : memref<1xf32, #tpu.memory_space<smem>>
    return
  }
}

</mosaic_0001>

<llo_original>
// kernel: tpu_custom_call.1
$region0: #{tpu_custom_call.1}
  #allocation0 [shape = 'u32[]', space=smem, size = 0x4, offset = 0x4, fixed_abs, tag = 'smem constant byte address 0x4 - core index']
  #allocation1 [shape = 'u32[144,128]{1,0:T(1,128)}', space=vmem, size = 0x12000, scoped, tag = 'internal scratch']
  %s0 = inlined_call_operand.hbm [shape: f32[16,128], index: 0, kind: input, shape index: {}]
  %s1 = inlined_call_operand.hbm [shape: bf16[16,128], index: 1, kind: input, shape index: {}]
  %s2 = inlined_call_operand.hbm [shape: f32[1], index: 2, kind: output, shape index: {}]
  %s3 = sld [smem:[#allocation0]]
  $region26: #{tpu_custom_call.1} parent=0
    _
  %s5 = ssub.s32 1, %s3
  %s6 = scalar_select 0, %s5, %s3
  $region1: #{tpu_custom_call.1} parent=0
    #allocation2 [shape = 'u8[8192]{0}', space=vmem, size = 0x2000, scoped, tag = 'input window, operand 0, single buffered']
    #allocation3 [shape = 's32[1]{0}', space=sflag, size = 0x4, scoped, tag = 'scoped memory for tpu_custom_call.1']
    #allocation4 [shape = 's32[1]{0}', space=sflag, size = 0x4, scoped, tag = 'scoped memory for tpu_custom_call.1']
    #allocation5 [shape = 'u8[4096]{0}', space=vmem, size = 0x1000, scoped, tag = 'input window, operand 1, single buffered']
    #allocation6 [shape = 's32[1]{0}', space=sflag, size = 0x4, scoped, tag = 'scoped memory for tpu_custom_call.1']
    #allocation7 [shape = 'u8[512]{0}', space=smem, size = 0x200, scoped, tag = 'output window, operand 0, single buffered']
    %7 = vsyncpa [#allocation3], 0
    %8 = vsyncpa [#allocation6], 0
    %9 = vsyncpa [#allocation4], 0
    // Predicated region
    $region2: #{tpu_custom_call.1} parent=1 // pred_check
      _
    $region3: #{tpu_custom_call.1} parent=1 // pred_check_branch
      %11 = sbr.rel (0) target = $region5
    $region4: #{tpu_custom_call.1} parent=1 // pred_region
      %s13 = ssub.s32 256, 256
      %14 = vsyncadd [#allocation3], %s13
      %s15 = sshll.u32 [#allocation2], 4
      %s16 = int_to_ptr.vmem [resolvable:$true] %s15
      %21 = dma.hbm_to_vmem [thread:$0]  %s0, 256, %s16, [#allocation3], 128, 128, 8
    $region5: #{tpu_custom_call.1} parent=1 // pred_fallthru
      _
    // Predicated region
    $region6: #{tpu_custom_call.1} parent=1 // pred_check
      _
    $region7: #{tpu_custom_call.1} parent=1 // pred_check_branch
      %23 = sbr.rel (0) target = $region9
    $region8: #{tpu_custom_call.1} parent=1 // pred_region
      %s25 = ssub.s32 128, 128
      %26 = vsyncadd [#allocation6], %s25
      %s27 = sshll.u32 [#allocation5], 4
      %s28 = int_to_ptr.vmem [resolvable:$true] %s27
      %33 = dma.hbm_to_vmem [thread:$0]  %s1, 128, %s28, [#allocation6], 64, 64, 4
    $region9: #{tpu_custom_call.1} parent=1 // pred_fallthru
      _
    // Predicated region
    $region10: #{tpu_custom_call.1} parent=1 // pred_check
      _
    $region11: #{tpu_custom_call.1} parent=1 // pred_check_branch
      %35 = sbr.rel (0) target = $region13
    $region12: #{tpu_custom_call.1} parent=1 // pred_region
      %36 = dma.done [#allocation3], 256
    $region13: #{tpu_custom_call.1} parent=1 // pred_fallthru
      _
    // Predicated region
    $region14: #{tpu_custom_call.1} parent=1 // pred_check
      _
    $region15: #{tpu_custom_call.1} parent=1 // pred_check_branch
      %38 = sbr.rel (0) target = $region17
    $region16: #{tpu_custom_call.1} parent=1 // pred_region
      %39 = dma.done [#allocation6], 128
    $region17: #{tpu_custom_call.1} parent=1 // pred_fallthru
      _
    %v41 = vld [vmem:[#allocation2] sm:$0xff]
    %v42 = vld [vmem:[#allocation2 + $0x8] sm:$0xff]
    %v43 = vld [vmem:[#allocation5] sm:$0xf]
    %v44 = vld [vmem:[#allocation5 + $0x4] sm:$0xf]
    %v45 = vlaneseq
    %v46 = vshrl.u32 %v45, 7
    %v47 = vadd.s32 %v46, 8
    %v48 = vlaneseq
    %v49 = vand.u32 %v48, 127
    %vm50 = vcmp.ne.s32.totalorder %v46, %v49
    %vm51 = vcmp.ne.s32.totalorder %v47, %v49
    %v54 = vunpack.c.l.b16 %v43
    %v55 = vunpack.c.l.b16 %v44
    %v56 = vpack.c.b16 %v55, %v54
    %58 = vmatprep.subr.bf16.mxu0 0
    %59 = vmatpush1.bf16.xpose.msra.mxu0 0
    %60 = vmatprep.subr.bf16.mxu0 0
    %61 = vmatpush1.bf16.xpose.msra.mxu0 0
    %62 = vmatprep.subr.bf16.mxu0 0
    %63 = vmatpush1.bf16.xpose.msra.mxu0 0
    %64 = vmatprep.subr.bf16.mxu0 0
    %65 = vmatpush1.bf16.xpose.msra.mxu0 0
    %66 = vmatprep.subr.bf16.mxu0 0
    %67 = vmatpush1.bf16.xpose.msra.mxu0 0
    %68 = vmatprep.subr.bf16.mxu0 0
    %69 = vmatpush1.bf16.xpose.msra.mxu0 0
    %70 = vmatprep.subr.bf16.mxu0 0
    %71 = vmatpush1.bf16.xpose.msra.mxu0 0
    %72 = vmatprep.subr.bf16.mxu0 0
    %73 = vmatpush1.bf16.xpose.msra.mxu0 %v56
    %74 = vmatprep.subr.bf16.mxu0 0
    %75 = vmatpush2.bf16.xpose.msra.mxu0 0
    %76 = vmatprep.subr.bf16.mxu0 0
    %77 = vmatpush2.bf16.xpose.msra.mxu0 0
    %78 = vmatprep.subr.bf16.mxu0 0
    %79 = vmatpush2.bf16.xpose.msra.mxu0 0
    %80 = vmatprep.subr.bf16.mxu0 0
    %81 = vmatpush2.bf16.xpose.msra.mxu0 0
    %82 = vmatprep.subr.bf16.mxu0 0
    %83 = vmatpush2.bf16.xpose.msra.mxu0 0
    %84 = vmatprep.subr.bf16.mxu0 0
    %85 = vmatpush2.bf16.xpose.msra.mxu0 0
    %86 = vmatprep.subr.bf16.mxu0 0
    %87 = vmatpush2.bf16.xpose.msra.mxu0 0
    %88 = vmatprep.subr.bf16.mxu0 0
    %89 = vmatpush2.bf16.xpose.msra.mxu0 0
    %90 = vmatprep.mubr.bf16.mxu0 0
    %91 = vmatmul.mubr.bf16.gmra.mxu0 %v56
    %v92 = vpop.f32.mrf.mxu0
    %v93 = vadd.f32 0.0, %v92
    %v94 = vpop.f32.mrf.mxu0
    %v95 = vpop.f32.mrf.mxu0
    %v96 = vadd.f32 0.0, %v95
    %v97 = vpop.f32.mrf.mxu0
    %98 = vdwg.mxu0
    %v99 = vsel %vm50, %v93, 0.0
    %v100 = vsel %vm51, %v96, 0.0
    %vm101 = vcmask 130048
    %v102 = vsel %vm101, %v99, 0.0
    %v103 = vsel %vm101, %v100, 0.0
    %v104 = vadd.f32 %v102, %v103
    %v105 = vrot.slane %v104, 4
    %v106 = vadd.f32 %v104, %v105
    %v107 = vrot.slane %v106, 2
    %v108 = vadd.f32 %v106, %v107
    %v109 = vrot.slane %v108, 1
    %v110 = vadd.f32 %v108, %v109
    %vm111 = vcmp.lt.s32.totalorder %v49, 8
    %v112 = vsel %vm111, %v110, 1.0
    %v113 = vrcp.pop %v112
    %v114 = vmul.f32 %v99, %v113
    %v115 = vmul.f32 %v100, %v113
    %v116 = vmul.f32 %v41, %v41
    %v117 = vmul.f32 %v42, %v42
    %118 = vadd.xlane.f32.xlu0 %v116
    %v119 = vpop.xlane.xlu0 %118
    %120 = vadd.xlane.f32.xlu0 %v117
    %v121 = vpop.xlane.xlu0 %120
    %122 = vmatprep.subr.mxu0 0.0
    %123 = vmatpush1.xpose.msra.mxu0 0.0
    %124 = vmatprep.subr.mxu0 0.0
    %125 = vmatpush1.xpose.msra.mxu0 0.0
    %126 = vmatprep.subr.mxu0 0.0
    %127 = vmatpush1.xpose.msra.mxu0 0.0
    %128 = vmatprep.subr.mxu0 0.0
    %129 = vmatpush1.xpose.msra.mxu0 0.0
    %130 = vmatprep.subr.mxu0 0.0
    %131 = vmatpush1.xpose.msra.mxu0 0.0
    %132 = vmatprep.subr.mxu0 0.0
    %133 = vmatpush1.xpose.msra.mxu0 0.0
    %134 = vmatprep.subr.mxu0 0.0
    %135 = vmatpush1.xpose.msra.mxu0 0.0
    %136 = vmatprep.subr.mxu0 0.0
    %137 = vmatpush1.xpose.msra.mxu0 0.0
    %138 = vmatprep.subr.mxu0 0.0
    %139 = vmatpush1.xpose.msra.mxu0 0.0
    %140 = vmatprep.subr.mxu0 0.0
    %141 = vmatpush1.xpose.msra.mxu0 0.0
    %142 = vmatprep.subr.mxu0 0.0
    %143 = vmatpush1.xpose.msra.mxu0 0.0
    %144 = vmatprep.subr.mxu0 0.0
    %145 = vmatpush1.xpose.msra.mxu0 0.0
    %146 = vmatprep.subr.mxu0 0.0
    %147 = vmatpush1.xpose.msra.mxu0 0.0
    %148 = vmatprep.subr.mxu0 0.0
    %149 = vmatpush1.xpose.msra.mxu0 0.0
    %150 = vmatprep.subr.mxu0 0.0
    %151 = vmatpush1.xpose.msra.mxu0 %v42
    %152 = vmatprep.subr.mxu0 0.0
    %153 = vmatpush1.xpose.msra.mxu0 %v41
    %154 = vmatprep.subr.mxu0 0.0
    %155 = vmatpush2.xpose.msra.mxu0 0.0
    %156 = vmatprep.subr.mxu0 0.0
    %157 = vmatpush2.xpose.msra.mxu0 0.0
    %158 = vmatprep.subr.mxu0 0.0
    %159 = vmatpush2.xpose.msra.mxu0 0.0
    %160 = vmatprep.subr.mxu0 0.0
    %161 = vmatpush2.xpose.msra.mxu0 0.0
    %162 = vmatprep.subr.mxu0 0.0
    %163 = vmatpush2.xpose.msra.mxu0 0.0
    %164 = vmatprep.subr.mxu0 0.0
    %165 = vmatpush2.xpose.msra.mxu0 0.0
    %166 = vmatprep.subr.mxu0 0.0
    %167 = vmatpush2.xpose.msra.mxu0 0.0
    %168 = vmatprep.subr.mxu0 0.0
    %169 = vmatpush2.xpose.msra.mxu0 0.0
    %170 = vmatprep.subr.mxu0 0.0
    %171 = vmatpush2.xpose.msra.mxu0 0.0
    %172 = vmatprep.subr.mxu0 0.0
    %173 = vmatpush2.xpose.msra.mxu0 0.0
    %174 = vmatprep.subr.mxu0 0.0
    %175 = vmatpush2.xpose.msra.mxu0 0.0
    %176 = vmatprep.subr.mxu0 0.0
    %177 = vmatpush2.xpose.msra.mxu0 0.0
    %178 = vmatprep.subr.mxu0 0.0
    %179 = vmatpush2.xpose.msra.mxu0 0.0
    %180 = vmatprep.subr.mxu0 0.0
    %181 = vmatpush2.xpose.msra.mxu0 0.0
    %182 = vmatprep.subr.mxu0 0.0
    %183 = vmatpush2.xpose.msra.mxu0 0.0
    %184 = vmatprep.subr.mxu0 0.0
    %185 = vmatpush2.xpose.msra.mxu0 0.0
    %186 = vmatprep.mubr.f32.mxu0 0.0
    %187 = vmatmul.mubr.f32.gmra.mxu0 %v41
    %v188 = vpop.f32.mrf.mxu0
    %v189 = vadd.f32 0.0, %v188
    %v190 = vpop.f32.mrf.mxu0
    %191 = vmatprep.mubr.f32.mxu0 0.0
    %192 = vmatmul.mubr.f32.gmra.mxu0 %v42
    %v193 = vpop.f32.mrf.mxu0
    %v194 = vadd.f32 0.0, %v193
    %v195 = vpop.f32.mrf.mxu0
    %196 = vdwg.mxu0
    %197 = vxpose.xlu0.b32.start [1/16] %v119, 128
    %198 = vxpose.xlu0.b32.cont [2/16] %v121, 128
    %199 = vxpose.xlu0.b32.cont [3/16] 0.0, 128
    %200 = vxpose.xlu0.b32.cont [4/16] 0.0, 128
    %201 = vxpose.xlu0.b32.cont [5/16] 0.0, 128
    %202 = vxpose.xlu0.b32.cont [6/16] 0.0, 128
    %203 = vxpose.xlu0.b32.cont [7/16] 0.0, 128
    %204 = vxpose.xlu0.b32.cont [8/16] 0.0, 128
    %205 = vxpose.xlu0.b32.cont [9/16] 0.0, 128
    %206 = vxpose.xlu0.b32.cont [10/16] 0.0, 128
    %207 = vxpose.xlu0.b32.cont [11/16] 0.0, 128
    %208 = vxpose.xlu0.b32.cont [12/16] 0.0, 128
    %209 = vxpose.xlu0.b32.cont [13/16] 0.0, 128
    %210 = vxpose.xlu0.b32.cont [14/16] 0.0, 128
    %211 = vxpose.xlu0.b32.cont [15/16] 0.0, 128
    %212 = vxpose.xlu0.b32.end [16/16] 0.0, 128
    %v213 = vpop.trf.xlu0
    %v214 = vpop.trf.xlu0
    %v215 = vpop.trf.xlu0
    %v216 = vpop.trf.xlu0
    %v217 = vpop.trf.xlu0
    %v218 = vpop.trf.xlu0
    %v219 = vpop.trf.xlu0
    %v220 = vpop.trf.xlu0
    %v221 = vpop.trf.xlu0
    %v222 = vpop.trf.xlu0
    %v223 = vpop.trf.xlu0
    %v224 = vpop.trf.xlu0
    %v225 = vpop.trf.xlu0
    %v226 = vpop.trf.xlu0
    %v227 = vpop.trf.xlu0
    %v228 = vpop.trf.xlu0
    %v229 = vlaneseq
    %v230 = vshrl.u32 %v229, 7
    %v231 = vsub.s32 0, %v230
    %v232 = vrot.slane %v213, %v231
    %v233 = vadd.f32 %v119, %v232
    %v234 = vadd.f32 %v121, %v232
    %v235 = vmul.f32 %v189, 2.0
    %v236 = vmul.f32 %v194, 2.0
    %v237 = vsub.f32 %v233, %v235
    %v238 = vsub.f32 %v234, %v236
    %v239 = vmax.f32 %v237, 0.0
    %v240 = vmax.f32 %v238, 0.0
    %v241 = vrsqrt.pop %v239
    %v242 = vmul.f32 %v239, %v241
    %vm243 = vcmp.eq.f32.partialorder %v239, inf
    %v244 = vsel %vm243, %v239, %v242
    %vm245 = vcmp.eq.f32.partialorder %v239, 0.0
    %v246 = vand.u32 %v239, 2147483648
    %v247 = vsel %vm245, %v246, %v244
    %v248 = vrsqrt.pop %v240
    %v249 = vmul.f32 %v240, %v248
    %vm250 = vcmp.eq.f32.partialorder %v240, inf
    %v251 = vsel %vm250, %v240, %v249
    %vm252 = vcmp.eq.f32.partialorder %v240, 0.0
    %v253 = vand.u32 %v240, 2147483648
    %v254 = vsel %vm252, %v253, %v251
    %v255 = vmul.f32 %v247, -0.1
    %v256 = vmul.f32 %v254, -0.1
    %v257 = vmul.f32 %v255, 1.442695
    %v258 = vpow.pop %v257
    %v259 = vmul.f32 %v256, 1.442695
    %v260 = vpow.pop %v259
    %vm261 = vcmp.lt.s32.totalorder %v46, 8
    %vm262 = vcmp.lt.s32.totalorder %v47, 8
    %v263 = vsel %vm261, 1, 0
    %v264 = vsel %vm262, 1, 0
    %vm265 = vcmp.eq.s32.totalorder %v263, 1
    %vm266 = vcmp.eq.s32.totalorder %v264, 1
    %v267 = vsel %vm265, %v258, 0.0
    %v268 = vsel %vm266, %v260, 0.0
    %v269 = vsel %vm101, %v267, 0.0
    %v270 = vsel %vm101, %v268, 0.0
    %v271 = vadd.f32 %v269, %v270
    %v272 = vrot.slane %v271, 4
    %v273 = vadd.f32 %v271, %v272
    %v274 = vrot.slane %v273, 2
    %v275 = vadd.f32 %v273, %v274
    %v276 = vrot.slane %v275, 1
    %v277 = vadd.f32 %v275, %v276
    %v278 = vsub.f32 %v277, 1.0
    %v279 = vsel %vm111, %v278, 1.0
    %v280 = vsub.f32 0.0, %v114
    %v281 = vsub.f32 0.0, %v115
    %v282 = vlog2.pop %v279
    %v283 = vmul.f32 %v282, 0.6931472
    %v284 = vsub.f32 %v255, %v283
    %v285 = vsub.f32 %v256, %v283
    %v286 = vmul.f32 %v280, %v284
    %v287 = vmul.f32 %v281, %v285
    %v288 = vsel %vm101, %v286, 0.0
    %v289 = vsel %vm101, %v287, 0.0
    %v290 = vadd.f32 %v288, %v289
    %291 = vadd.xlane.f32.xlu0 %v290
    %v292 = vpop.xlane.xlu0 %291
    %v293 = vrot.slane %v292, 4
    %v294 = vadd.f32 %v292, %v293
    %v295 = vrot.slane %v294, 2
    %v296 = vadd.f32 %v294, %v295
    %v297 = vrot.slane %v296, 1
    %v298 = vadd.f32 %v296, %v297
    %s299 = vtos %v298
    %s300 = scalar_lea.smem [#allocation7], 0
    %301 = sst [smem:[%s300]] %s299
    // Predicated region
    $region18: #{tpu_custom_call.1} parent=1 // pred_check
      _
    $region19: #{tpu_custom_call.1} parent=1 // pred_check_branch
      %303 = sbr.rel (0) target = $region21
    $region20: #{tpu_custom_call.1} parent=1 // pred_region
      %s305 = ssub.s32 16, 16
      %306 = vsyncadd [#allocation4], %s305
      %309 = dma.smem_to_hbm [#allocation7], 16, %s2, [#allocation4]
    $region21: #{tpu_custom_call.1} parent=1 // pred_fallthru
      _
    // Predicated region
    $region22: #{tpu_custom_call.1} parent=1 // pred_check
      _
    $region23: #{tpu_custom_call.1} parent=1 // pred_check_branch
      %311 = sbr.rel (0) target = $region25
    $region24: #{tpu_custom_call.1} parent=1 // pred_region
      %312 = dma.done [#allocation4], 16
    $region25: #{tpu_custom_call.1} parent=1 // pred_fallthru
      _
    %313 = sfence
    %314 = vsyncpa [#allocation3], 1
    %315 = vsyncpa [#allocation6], 1
    %316 = vsyncpa [#allocation4], 1

</llo_original>
